<compile_context>
chip_gen: v5e
topology: v5e:2x2
jax: 0.10.0
libtpu: 0.0.40
codegen_flags: <defaults>
</compile_context>

<pallas_src>
import functools

import jax
import jax.numpy as jnp
from jax.experimental import pallas as pl
from jax.experimental.pallas import tpu as pltpu


def _sum_ce_kernel(x_ref, t_ref, o_ref, *, scale):
    """One batch tile: x_ref/t_ref are (TB, C); o_ref is (TB, 1)."""
    x = x_ref[...].astype(jnp.float32)                      # (TB, C)
    t = t_ref[...]                                          # (TB, C), native dtype

    # Numerically stable masked softmax, fused into two lane reductions.
    m = jnp.max(x, axis=1, keepdims=True)                   # (TB, 1)
    e = jnp.exp(x - m)                                      # (TB, C)  (EUP)
    den = jnp.sum(e, axis=1, keepdims=True)                 # (TB, 1)  (XLU)
    num = jnp.sum(jnp.where(t > 0, e, 0.0), axis=1, keepdims=True)

    # -log(num / den) == log(den) - log(num); logs are on (TB, 1) only.
    nlp = jnp.log(den) - jnp.log(num)                       # (TB, 1)
    o_ref[...] = nlp * jnp.float32(scale)


def _choose_block_b(B, C, *, input_budget_bytes=16 * 1024 * 1024):
    """Largest multiple-of-8 batch tile whose double-buffered inputs fit budget."""
    # 2 inputs x 2 pipeline buffers x TB x C x 4 bytes (f32 upper bound).
    tb = input_budget_bytes // (2 * 2 * C * 4)
    tb = max(8, min(1024, (tb // 8) * 8))
    if tb >= B:
        return B          # whole batch in one block (block dim == array dim is legal)
    return tb


def sum_cross_entropy_loss(inp, target, *, tgt_avg=False, block_b=None):
    """Pallas TPU implementation of SumCrossEntropyLoss.forward.

    inp, target: (B, C) float arrays (f32 or bf16). Returns (B,) float32.
    """
    assert inp.shape == target.shape and inp.ndim == 2
    B, C = inp.shape

    tb = block_b if block_b is not None else _choose_block_b(B, C)
    grid = (pl.cdiv(B, tb),)

    # tgt_avg=False: fold the static 1/bs into the kernel (free).
    # tgt_avg=True : emit raw nlp and normalize by the global mask count in the
    #                wrapper (a per-tile sum inside the kernel would be wrong).
    scale = 1.0 if tgt_avg else 1.0 / B
    kernel = functools.partial(_sum_ce_kernel, scale=scale)

    out = pl.pallas_call(
        kernel,
        out_shape=jax.ShapeDtypeStruct((B, 1), jnp.float32),
        grid_spec=pl.GridSpec(
            grid=grid,
            in_specs=[
                pl.BlockSpec((tb, C), lambda i: (i, 0)),
                pl.BlockSpec((tb, C), lambda i: (i, 0)),
            ],
            out_specs=pl.BlockSpec((tb, 1), lambda i: (i, 0)),
        ),
        compiler_params=pltpu.CompilerParams(
            dimension_semantics=("parallel",),       # megacore-shard the batch axis
            vmem_limit_bytes=32 * 1024 * 1024,       # safe on v5e/v6e/v7x
        ),
    )(inp, target)

    nlp = out.reshape(B)
    if tgt_avg:
        nlp = nlp / jnp.sum((target > 0).astype(jnp.float32))
    return nlp


def _reference(inp, target, *, tgt_avg=False):
    bs = inp.shape[0]
    mask = (target > 0).astype(jnp.float32)
    p = jax.nn.softmax(inp.astype(jnp.float32), axis=1)
    psum = jnp.sum(p * mask, axis=1)
    nlp = -jnp.log(psum)
    if tgt_avg:
        return nlp / jnp.sum(mask)
    return nlp / bs


if __name__ == "__main__":
    key = jax.random.PRNGKey(0)
    k1, k2 = jax.random.split(key)

    B, C = 32, 128
    x = jax.random.normal(k1, (B, C), dtype=jnp.float32)
    # target: mixed-sign values so that (target > 0) is a non-trivial mask
    tgt = jax.random.normal(k2, (B, C), dtype=jnp.float32)

    # default tgt_avg=False path (single-tile batch)
    out = jax.block_until_ready(sum_cross_entropy_loss(x, tgt, tgt_avg=False))
    ref = _reference(x, tgt, tgt_avg=False)
    assert out.shape == (B,)
    assert jnp.allclose(out, ref, atol=1e-5, rtol=1e-5)

    # tgt_avg=True path (wrapper-side global mask-count normalization)
    out_avg = jax.block_until_ready(sum_cross_entropy_loss(x, tgt, tgt_avg=True))
    ref_avg = _reference(x, tgt, tgt_avg=True)
    assert jnp.allclose(out_avg, ref_avg, atol=1e-5, rtol=1e-5)

    # force a multi-step grid (4 batch tiles of 8) to exercise the pipeline
    out_tiled = jax.block_until_ready(
        sum_cross_entropy_loss(x, tgt, tgt_avg=False, block_b=8))
    assert jnp.allclose(out_tiled, ref, atol=1e-5, rtol=1e-5)

    out_tiled_avg = jax.block_until_ready(
        sum_cross_entropy_loss(x, tgt, tgt_avg=True, block_b=8))
    assert jnp.allclose(out_tiled_avg, ref_avg, atol=1e-5, rtol=1e-5)

    print("KERNEL_OK")
</pallas_src>

<mosaic_0001>
module attributes {stable_mosaic.version = 11 : i64} {
  func.func @_sum_ce_kernel(%arg0: i32, %arg1: memref<32x128xf32, #tpu.memory_space<vmem>>, %arg2: memref<32x128xf32, #tpu.memory_space<vmem>>, %arg3: memref<32x1xf32, #tpu.memory_space<vmem>>) attributes {dimension_semantics = [#tpu.dimension_semantics<parallel>], iteration_bounds = array<i64: 1>, scalar_prefetch = 0 : i64, scratch_operands = 0 : i64, tpu.core_type = #tpu.core_type<tc>, window_params = [{transform_indices = @transform_0, window_bounds = array<i64: 32, 128>}, {transform_indices = @transform_1, window_bounds = array<i64: 32, 128>}, {transform_indices = @transform_2, window_bounds = array<i64: 32, 1>}]} {
    %c0 = arith.constant 0 : index
    %c0_0 = arith.constant 0 : index
    %0 = vector.load %arg1[%c0, %c0_0] : memref<32x128xf32, #tpu.memory_space<vmem>>, vector<32x128xf32>
    %c0_1 = arith.constant 0 : index
    %c0_2 = arith.constant 0 : index
    %1 = vector.load %arg2[%c0_1, %c0_2] : memref<32x128xf32, #tpu.memory_space<vmem>>, vector<32x128xf32>
    %cst = arith.constant dense<0xFF800000> : vector<32xf32>
    %2 = vector.multi_reduction <maximumf>, %0, %cst [1] : vector<32x128xf32> to vector<32xf32>
    %3 = vector.shape_cast %2 : vector<32xf32> to vector<32x1xf32>
    %4 = vector.broadcast %3 : vector<32x1xf32> to vector<32x128xf32>
    %5 = arith.subf %0, %4 : vector<32x128xf32>
    %6 = math.exp %5 : vector<32x128xf32>
    %cst_3 = arith.constant dense<0.000000e+00> : vector<32xf32>
    %7 = vector.multi_reduction <add>, %6, %cst_3 [1] : vector<32x128xf32> to vector<32xf32>
    %8 = vector.shape_cast %7 : vector<32xf32> to vector<32x1xf32>
    %cst_4 = arith.constant 0.000000e+00 : f32
    %9 = vector.broadcast %cst_4 : f32 to vector<32x128xf32>
    %10 = arith.cmpf ogt, %1, %9 : vector<32x128xf32>
    %cst_5 = arith.constant 0.000000e+00 : f32
    %11 = vector.broadcast %cst_5 : f32 to vector<32x128xf32>
    %12 = arith.select %10, %6, %11 : vector<32x128xi1>, vector<32x128xf32>
    %cst_6 = arith.constant dense<0.000000e+00> : vector<32xf32>
    %13 = vector.multi_reduction <add>, %12, %cst_6 [1] : vector<32x128xf32> to vector<32xf32>
    %14 = vector.shape_cast %13 : vector<32xf32> to vector<32x1xf32>
    %15 = math.log %8 : vector<32x1xf32>
    %16 = math.log %14 : vector<32x1xf32>
    %17 = arith.subf %15, %16 : vector<32x1xf32>
    %cst_7 = arith.constant 3.125000e-02 : f32
    %18 = vector.broadcast %cst_7 : f32 to vector<32x1xf32>
    %19 = arith.mulf %17, %18 : vector<32x1xf32>
    %c0_8 = arith.constant 0 : index
    %c0_9 = arith.constant 0 : index
    %20 = vector.load %arg3[%c0_8, %c0_9] : memref<32x1xf32, #tpu.memory_space<vmem>>, vector<32x1xf32>
    tpu.vector_store %arg3[%c0_8, %c0_9], %19 {strides = array<i32>} : memref<32x1xf32, #tpu.memory_space<vmem>>, vector<32x1xf32>,
    return
  }
  func.func @transform_0(%arg0: i32) -> (i32, i32) {
    %c0_i32 = arith.constant 0 : i32
    %c0_i32_0 = arith.constant 0 : i32
    return %arg0, %c0_i32 : i32, i32
  }
  func.func @transform_1(%arg0: i32) -> (i32, i32) {
    %c0_i32 = arith.constant 0 : i32
    %c0_i32_0 = arith.constant 0 : i32
    return %arg0, %c0_i32 : i32, i32
  }
  func.func @transform_2(%arg0: i32) -> (i32, i32) {
    %c0_i32 = arith.constant 0 : i32
    %c0_i32_0 = arith.constant 0 : i32
    return %arg0, %c0_i32 : i32, i32
  }
}

</mosaic_0001>

<llo_original>
// kernel: tpu_custom_call.1
$region0: #{tpu_custom_call.1}
  #allocation0 [shape = 'u32[]', space=smem, size = 0x4, offset = 0x4, fixed_abs, tag = 'smem constant byte address 0x4 - core index']
  #allocation1 [shape = 'u32[72,128]{1,0:T(1,128)}', space=vmem, size = 0x9000, scoped, tag = 'internal scratch']
  %s0 = inlined_call_operand.hbm [shape: f32[32,128], index: 0, kind: input, shape index: {}]
  %s1 = inlined_call_operand.hbm [shape: f32[32,128], index: 1, kind: input, shape index: {}]
  %s2 = inlined_call_operand.vmem [shape: f32[32,1], index: 2, kind: output, shape index: {}]
  %s3 = sld [smem:[#allocation0]]
  $region26: #{tpu_custom_call.1} parent=0
    _
  %s5 = ssub.s32 1, %s3
  %s6 = scalar_select 0, %s5, %s3
  $region1: #{tpu_custom_call.1} parent=0
    #allocation2 [shape = 'u8[16384]{0}', space=vmem, size = 0x4000, scoped, tag = 'input window, operand 0, single buffered']
    #allocation3 [shape = 's32[1]{0}', space=sflag, size = 0x4, scoped, tag = 'scoped memory for tpu_custom_call.1']
    #allocation4 [shape = 'u8[16384]{0}', space=vmem, size = 0x4000, scoped, tag = 'input window, operand 1, single buffered']
    #allocation5 [shape = 's32[1]{0}', space=sflag, size = 0x4, scoped, tag = 'scoped memory for tpu_custom_call.1']
    %7 = vsyncpa [#allocation3], 0
    %8 = vsyncpa [#allocation5], 0
    // Predicated region
    $region2: #{tpu_custom_call.1} parent=1 // pred_check
      _
    $region3: #{tpu_custom_call.1} parent=1 // pred_check_branch
      %10 = sbr.rel (0) target = $region5
    $region4: #{tpu_custom_call.1} parent=1 // pred_region
      %12 = vsyncadd [#allocation3], 0
      %s13 = sshll.u32 %s0, 4
      %s14 = int_to_ptr.hbm [resolvable:$true] %s13
      %s15 = sshll.u32 [#allocation2], 4
      %s16 = int_to_ptr.vmem [resolvable:$true] %s15
      %21 = dma.hbm_to_vmem [thread:$0]  %s14, 512, %s16, [#allocation3], 128, 128, 8
    $region5: #{tpu_custom_call.1} parent=1 // pred_fallthru
      _
    // Predicated region
    $region6: #{tpu_custom_call.1} parent=1 // pred_check
      _
    $region7: #{tpu_custom_call.1} parent=1 // pred_check_branch
      %23 = sbr.rel (0) target = $region9
    $region8: #{tpu_custom_call.1} parent=1 // pred_region
      %25 = vsyncadd [#allocation5], 0
      %s26 = sshll.u32 %s1, 4
      %s27 = int_to_ptr.hbm [resolvable:$true] %s26
      %s28 = sshll.u32 [#allocation4], 4
      %s29 = int_to_ptr.vmem [resolvable:$true] %s28
      %34 = dma.hbm_to_vmem [thread:$0]  %s27, 512, %s29, [#allocation5], 128, 128, 8
    $region9: #{tpu_custom_call.1} parent=1 // pred_fallthru
      _
    // Predicated region
    $region10: #{tpu_custom_call.1} parent=1 // pred_check
      _
    $region11: #{tpu_custom_call.1} parent=1 // pred_check_branch
      %36 = sbr.rel (0) target = $region13
    $region12: #{tpu_custom_call.1} parent=1 // pred_region
      %38 = dma.done [#allocation3], 512
    $region13: #{tpu_custom_call.1} parent=1 // pred_fallthru
      _
    // Predicated region
    $region14: #{tpu_custom_call.1} parent=1 // pred_check
      _
    $region15: #{tpu_custom_call.1} parent=1 // pred_check_branch
      %40 = sbr.rel (0) target = $region17
    $region16: #{tpu_custom_call.1} parent=1 // pred_region
      %42 = dma.done [#allocation5], 512
    $region17: #{tpu_custom_call.1} parent=1 // pred_fallthru
      _
    %v43 = vld [vmem:[#allocation2] sm:$0xff]
    %v44 = vld [vmem:[#allocation2 + $0x8] sm:$0xff]
    %v45 = vld [vmem:[#allocation2 + $0x10] sm:$0xff]
    %v46 = vld [vmem:[#allocation2 + $0x18] sm:$0xff]
    %v47 = vld [vmem:[#allocation4] sm:$0xff]
    %v48 = vld [vmem:[#allocation4 + $0x8] sm:$0xff]
    %v49 = vld [vmem:[#allocation4 + $0x10] sm:$0xff]
    %v50 = vld [vmem:[#allocation4 + $0x18] sm:$0xff]
    %51 = vmax.xlane.f32.xlu0 %v43
    %v52 = vpop.xlane.xlu0 %51
    %53 = vmax.xlane.f32.xlu0 %v44
    %v54 = vpop.xlane.xlu0 %53
    %55 = vmax.xlane.f32.xlu0 %v45
    %v56 = vpop.xlane.xlu0 %55
    %57 = vmax.xlane.f32.xlu0 %v46
    %v58 = vpop.xlane.xlu0 %57
    %v59 = vsub.f32 %v43, %v52
    %v60 = vsub.f32 %v44, %v54
    %v61 = vsub.f32 %v45, %v56
    %v62 = vsub.f32 %v46, %v58
    %v63 = vmul.f32 %v59, 1.442695
    %v64 = vpow.pop %v63
    %v65 = vmul.f32 %v60, 1.442695
    %v66 = vpow.pop %v65
    %v67 = vmul.f32 %v61, 1.442695
    %v68 = vpow.pop %v67
    %v69 = vmul.f32 %v62, 1.442695
    %v70 = vpow.pop %v69
    %71 = vadd.xlane.f32.xlu0 %v64
    %v72 = vpop.xlane.xlu0 %71
    %73 = vadd.xlane.f32.xlu0 %v66
    %v74 = vpop.xlane.xlu0 %73
    %75 = vadd.xlane.f32.xlu0 %v68
    %v76 = vpop.xlane.xlu0 %75
    %77 = vadd.xlane.f32.xlu0 %v70
    %v78 = vpop.xlane.xlu0 %77
    %vm79 = vcmp.gt.f32.partialorder %v47, 0.0
    %vm80 = vcmp.gt.f32.partialorder %v48, 0.0
    %vm81 = vcmp.gt.f32.partialorder %v49, 0.0
    %vm82 = vcmp.gt.f32.partialorder %v50, 0.0
    %v83 = vsel %vm79, %v64, 0.0
    %v84 = vsel %vm80, %v66, 0.0
    %v85 = vsel %vm81, %v68, 0.0
    %v86 = vsel %vm82, %v70, 0.0
    %87 = vadd.xlane.f32.xlu0 %v83
    %v88 = vpop.xlane.xlu0 %87
    %89 = vadd.xlane.f32.xlu0 %v84
    %v90 = vpop.xlane.xlu0 %89
    %91 = vadd.xlane.f32.xlu0 %v85
    %v92 = vpop.xlane.xlu0 %91
    %93 = vadd.xlane.f32.xlu0 %v86
    %v94 = vpop.xlane.xlu0 %93
    %v95 = vlog2.pop %v72
    %v96 = vmul.f32 %v95, 0.6931472
    %v97 = vlog2.pop %v74
    %v98 = vmul.f32 %v97, 0.6931472
    %v99 = vlog2.pop %v76
    %v100 = vmul.f32 %v99, 0.6931472
    %v101 = vlog2.pop %v78
    %v102 = vmul.f32 %v101, 0.6931472
    %v103 = vlog2.pop %v88
    %v104 = vmul.f32 %v103, 0.6931472
    %v105 = vlog2.pop %v90
    %v106 = vmul.f32 %v105, 0.6931472
    %v107 = vlog2.pop %v92
    %v108 = vmul.f32 %v107, 0.6931472
    %v109 = vlog2.pop %v94
    %v110 = vmul.f32 %v109, 0.6931472
    %v111 = vsub.f32 %v96, %v104
    %v112 = vsub.f32 %v98, %v106
    %v113 = vsub.f32 %v100, %v108
    %v114 = vsub.f32 %v102, %v110
    %v115 = vmul.f32 %v111, 0.03125
    %v116 = vmul.f32 %v112, 0.03125
    %v117 = vmul.f32 %v113, 0.03125
    %v118 = vmul.f32 %v114, 0.03125
    %vm119 = vcmask 7168
    %120 = vst.msk [vmem:[%s2] sm:$0xff] %vm119, %v115
    %121 = vst.msk [vmem:[%s2 + $0x8] sm:$0xff] %vm119, %v116
    %122 = vst.msk [vmem:[%s2 + $0x10] sm:$0xff] %vm119, %v117
    %123 = vst.msk [vmem:[%s2 + $0x18] sm:$0xff] %vm119, %v118
    // Predicated region
    $region18: #{tpu_custom_call.1} parent=1 // pred_check
      _
    $region19: #{tpu_custom_call.1} parent=1 // pred_check_branch
      %125 = sbr.rel (0) target = $region21
    $region20: #{tpu_custom_call.1} parent=1 // pred_region
      _
    $region21: #{tpu_custom_call.1} parent=1 // pred_fallthru
      _
    // Predicated region
    $region22: #{tpu_custom_call.1} parent=1 // pred_check
      _
    $region23: #{tpu_custom_call.1} parent=1 // pred_check_branch
      %127 = sbr.rel (0) target = $region25
    $region24: #{tpu_custom_call.1} parent=1 // pred_region
      _
    $region25: #{tpu_custom_call.1} parent=1 // pred_fallthru
      _
    %128 = vsyncpa [#allocation3], 1
    %129 = vsyncpa [#allocation5], 1

</llo_original>
